<compile_context>
chip_gen: v7x
topology: tpu7x:2x2x1
jax: 0.10.0
libtpu: 0.0.40
codegen_flags: <defaults>
</compile_context>

<pallas_src>
import math

import jax
import jax.numpy as jnp
from jax import lax
from jax.experimental import pallas as pl
from jax.experimental.pallas import tpu as pltpu

_EPS = 1e-12  # torch.nn.functional.normalize default eps

# Sublane tile height per itemsize (f32 -> 8, bf16 -> 16, int8/fp8 -> 32).
_SUBLANE = {4: 8, 2: 16, 1: 32}


def _round_up(x: int, m: int) -> int:
    return ((x + m - 1) // m) * m


# ------------------------------ chip info ------------------------------------


def _chip_info():
    """(per-core VMEM capacity bytes, has_two_tensorcores)."""
    vmem_cap = 64 * 1024 * 1024  # conservative fallback (v7x per-TC VMEM)
    two_cores = False
    try:
        vmem_cap = int(pltpu.get_tpu_info().vmem_capacity_bytes)
    except Exception:
        pass
    try:
        kind = jax.devices()[0].device_kind.lower()
        two_cores = ("v7" in kind) or ("tpu7" in kind)
    except Exception:
        pass
    if two_cores:
        # Never assume more than the 64 MiB per-TC physical VMEM of v7x.
        vmem_cap = min(vmem_cap, 64 * 1024 * 1024)
    return vmem_cap, two_cores


# ----------------------------- kernels --------------------------------------


def _l2n_mid_kernel(x_ref, o_ref):
    # x_ref/o_ref: (tile_pre, C, tile_post); normalize over axis=1 (the C /
    # sublane axis -> plain VPU adds, no cross-lane XLU work).
    x = x_ref[...]
    xf = x.astype(jnp.float32)
    ssq = jnp.sum(xf * xf, axis=1, keepdims=True)
    inv = lax.rsqrt(jnp.maximum(ssq, _EPS * _EPS))  # single EUP op
    # Scale the native-dtype input (cheaper for bf16 than scaling the upcast).
    o_ref[...] = (x * inv.astype(x.dtype)).astype(o_ref.dtype)


def _l2n_last_kernel(x_ref, o_ref):
    # x_ref/o_ref: (tile_rows, N); normalize each row over the last (lane) axis.
    x = x_ref[...]
    xf = x.astype(jnp.float32)
    ssq = jnp.sum(xf * xf, axis=-1, keepdims=True)
    inv = lax.rsqrt(jnp.maximum(ssq, _EPS * _EPS))
    o_ref[...] = (x * inv.astype(x.dtype)).astype(o_ref.dtype)


# ------------------------- tile-size selection -------------------------------


def _choose_tiles_mid(pre, c, post, dtype, usable_bytes, two_cores):
    """Tiles for the (pre, C, post) layout (reduce over C, never tiled)."""
    itemsize = jnp.dtype(dtype).itemsize
    sub = _SUBLANE.get(itemsize, 8)
    c_pad = _round_up(c, sub)  # sublane padding of the C axis in VMEM
    # Bytes per (one pre-row, 128 lanes) cell of a block:
    #   2x double-buffered input + 2x double-buffered output (native dtype)
    #   + ~2 f32-sized temporaries created inside the kernel body.
    bytes_per_cell = c_pad * 128 * (4 * itemsize + 2 * 4)

    # Lane (post) dimension: lane-dense (multiple of 128) whenever possible.
    if post >= 128:
        lane_cells_total = pl.cdiv(post, 128)
        max_cells = max(1, usable_bytes // bytes_per_cell)
        lane_cells = min(lane_cells_total, max_cells)
        if lane_cells >= lane_cells_total:
            tile_post = post                 # full extent: always layout-legal
            lane_cells = lane_cells_total
        else:
            tile_post = lane_cells * 128     # multiple of 128, edge block masked
    else:
        # post < 128: full extent; output stores are masked (vst.msk).
        # TODO(synk): for small `post`, benchmark a relayout that presents a
        # lane-dense output slab vs. this masked-store path.
        tile_post = post
        lane_cells = 1

    # Row (pre) dimension: fill the remaining budget.
    per_row = lane_cells * bytes_per_cell
    tile_pre = max(1, min(pre, usable_bytes // per_row))

    # Give both v7x TensorCores work when the whole array fits in one block.
    if two_cores and tile_pre >= pre and tile_post >= post:
        if pre > 1:
            tile_pre = pl.cdiv(pre, 2)
        elif post >= 256:
            tile_post = min(post, _round_up(pl.cdiv(post, 2), 128))

    return int(tile_pre), int(tile_post)


def _choose_tile_rows(rows, n, dtype, usable_bytes, two_cores):
    """Row tile for the trailing-dim (rows, N) layout (reduce over N)."""
    itemsize = jnp.dtype(dtype).itemsize
    sub = _SUBLANE.get(itemsize, 8)
    per_row = _round_up(n, 128) * (4 * itemsize + 2 * 4)
    fit = max(1, usable_bytes // per_row)
    if fit >= rows:
        tile = rows                          # full extent: always layout-legal
    else:
        tile = max(sub, (fit // sub) * sub)  # multiple of sublane tile
    tile = min(tile, rows)

    # Split only on dual-TensorCore chips (v7x); on v5e/v6e the grid is a
    # serial loop and splitting small inputs is pure per-step overhead.
    if two_cores and tile >= rows and rows > sub:
        tile = min(rows, _round_up(pl.cdiv(rows, 2), sub))
    return int(tile)


# ------------------------------ wrapper --------------------------------------


def normalize_1dim(x: jax.Array, dim: int) -> jax.Array:
    """Equivalent of Normalize1Dim(dim)(x) == F.normalize(x, dim=dim, p=2)."""
    ndim = x.ndim
    dim = dim % ndim
    shape = x.shape
    c = shape[dim]
    pre = math.prod(shape[:dim]) if dim > 0 else 1
    post = math.prod(shape[dim + 1:]) if dim < ndim - 1 else 1

    vmem_cap, two_cores = _chip_info()
    # Explicit scoped-VMEM limit (v5e's 16 MiB default is not assumed); keep
    # comfortably under physical capacity, plus headroom for Mosaic internals.
    vmem_limit = int(vmem_cap * 0.75)
    usable = int(vmem_limit * 0.85)
    cparams = dict(vmem_limit_bytes=vmem_limit)

    if post > 1:
        # Layout-preserving reshape (no HBM data movement): lanes = post,
        # sublanes = C; reduce over C inside the kernel.
        x3 = x.reshape(pre, c, post)
        tile_pre, tile_post = _choose_tiles_mid(pre, c, post, x.dtype,
                                                usable, two_cores)
        grid = (pl.cdiv(pre, tile_pre), pl.cdiv(post, tile_post))
        out3 = pl.pallas_call(
            _l2n_mid_kernel,
            out_shape=jax.ShapeDtypeStruct((pre, c, post), x.dtype),
            grid_spec=pltpu.PrefetchScalarGridSpec(
                num_scalar_prefetch=0,
                grid=grid,
                in_specs=[pl.BlockSpec((tile_pre, c, tile_post),
                                       lambda i, j: (i, 0, j))],
                out_specs=pl.BlockSpec((tile_pre, c, tile_post),
                                       lambda i, j: (i, 0, j)),
            ),
            compiler_params=pltpu.CompilerParams(
                dimension_semantics=("parallel", "parallel"), **cparams),
        )(x3)
        return out3.reshape(shape)

    # `dim` is the trailing axis: (rows, C), reduce over lanes.  No transpose
    # needed since the axis is already last in memory.
    rows = pre
    x2 = x.reshape(rows, c)
    tile_rows = _choose_tile_rows(rows, c, x.dtype, usable, two_cores)
    out2 = pl.pallas_call(
        _l2n_last_kernel,
        out_shape=jax.ShapeDtypeStruct((rows, c), x.dtype),
        grid_spec=pltpu.PrefetchScalarGridSpec(
            num_scalar_prefetch=0,
            grid=(pl.cdiv(rows, tile_rows),),
            in_specs=[pl.BlockSpec((tile_rows, c), lambda i: (i, 0))],
            out_specs=pl.BlockSpec((tile_rows, c), lambda i: (i, 0)),
        ),
        compiler_params=pltpu.CompilerParams(
            dimension_semantics=("parallel",), **cparams),
    )(x2)
    return out2.reshape(shape)


# ------------------------------ reference ------------------------------------


def _reference(x, dim):
    n = jnp.sqrt(jnp.sum(jnp.square(x.astype(jnp.float32)), axis=dim,
                         keepdims=True))
    return (x.astype(jnp.float32) / jnp.maximum(n, _EPS)).astype(x.dtype)


if __name__ == "__main__":
    key = jax.random.PRNGKey(0)
    # PyTorch-style NCHW input; Normalize1Dim(dim=1) normalizes over channels.
    x = jax.random.normal(key, (2, 4, 16, 16), dtype=jnp.float32)
    dim = 1

    out = jax.block_until_ready(normalize_1dim(x, dim))

    ref = _reference(x, dim)
    assert out.shape == x.shape and out.dtype == x.dtype
    assert jnp.allclose(out, ref, atol=1e-5, rtol=1e-5)

    # Also exercise the trailing-dim path once (dim=-1).
    out_last = jax.block_until_ready(normalize_1dim(x, -1))
    assert jnp.allclose(out_last, _reference(x, -1), atol=1e-5, rtol=1e-5)

    print("KERNEL_OK")
</pallas_src>

<mosaic_0001>
module attributes {stable_mosaic.version = 11 : i64} {
  func.func @_l2n_mid_kernel(%arg0: i32, %arg1: i32, %arg2: memref<2x4x256xf32, #tpu.memory_space<vmem>>, %arg3: memref<2x4x256xf32, #tpu.memory_space<vmem>>) attributes {dimension_semantics = [#tpu.dimension_semantics<parallel>, #tpu.dimension_semantics<parallel>], iteration_bounds = array<i64: 1, 1>, scalar_prefetch = 0 : i64, scratch_operands = 0 : i64, tpu.core_type = #tpu.core_type<tc>, window_params = [{transform_indices = @transform_0, window_bounds = array<i64: 2, 4, 256>}, {transform_indices = @transform_1, window_bounds = array<i64: 2, 4, 256>}]} {
    %c0 = arith.constant 0 : index
    %c0_0 = arith.constant 0 : index
    %c0_1 = arith.constant 0 : index
    %0 = vector.load %arg2[%c0, %c0_0, %c0_1] : memref<2x4x256xf32, #tpu.memory_space<vmem>>, vector<2x4x256xf32>
    %1 = arith.mulf %0, %0 : vector<2x4x256xf32>
    %cst = arith.constant dense<0.000000e+00> : vector<2x256xf32>
    %2 = vector.multi_reduction <add>, %1, %cst [1] : vector<2x4x256xf32> to vector<2x256xf32>
    %3 = vector.shape_cast %2 : vector<2x256xf32> to vector<2x1x256xf32>
    %cst_2 = arith.constant 1.000000e-24 : f32
    %4 = vector.broadcast %cst_2 : f32 to vector<2x1x256xf32>
    %5 = arith.maximumf %3, %4 : vector<2x1x256xf32>
    %6 = math.rsqrt %5 : vector<2x1x256xf32>
    %7 = vector.broadcast %6 : vector<2x1x256xf32> to vector<2x4x256xf32>
    %8 = arith.mulf %0, %7 : vector<2x4x256xf32>
    %c0_3 = arith.constant 0 : index
    %c0_4 = arith.constant 0 : index
    %c0_5 = arith.constant 0 : index
    %9 = vector.load %arg3[%c0_3, %c0_4, %c0_5] : memref<2x4x256xf32, #tpu.memory_space<vmem>>, vector<2x4x256xf32>
    tpu.vector_store %arg3[%c0_3, %c0_4, %c0_5], %8 {strides = array<i32>} : memref<2x4x256xf32, #tpu.memory_space<vmem>>, vector<2x4x256xf32>,
    return
  }
  func.func @transform_0(%arg0: i32, %arg1: i32) -> (i32, i32, i32) {
    %c0_i32 = arith.constant 0 : i32
    %c0_i32_0 = arith.constant 0 : i32
    return %arg0, %c0_i32, %arg1 : i32, i32, i32
  }
  func.func @transform_1(%arg0: i32, %arg1: i32) -> (i32, i32, i32) {
    %c0_i32 = arith.constant 0 : i32
    %c0_i32_0 = arith.constant 0 : i32
    return %arg0, %c0_i32, %arg1 : i32, i32, i32
  }
}

</mosaic_0001>

<llo_original>
// kernel: tpu_custom_call.1
$region0: #{tpu_custom_call.1}
  #allocation0 [shape = 'u32[]', space=smem, size = 0x4, offset = 0x4, fixed_abs, tag = 'smem constant byte address 0x4 - core index']
  #allocation1 [shape = 'u32[144,128]{1,0:T(1,128)}', space=vmem, size = 0x12000, scoped, tag = 'internal scratch']
  %s0 = inlined_call_operand.hbm [shape: f32[2,4,256], index: 0, kind: input, shape index: {}]
  %s1 = inlined_call_operand.hbm [shape: f32[2,4,256], index: 1, kind: output, shape index: {}]
  %s2 = sld [smem:[#allocation0]]
  $region18: #{tpu_custom_call.1} parent=0
    _
  %s4 = ssub.s32 1, %s2
  %s5 = scalar_select 0, %s4, %s2
  $region1: #{tpu_custom_call.1} parent=0
    #allocation2 [shape = 'u8[8192]{0}', space=vmem, size = 0x2000, scoped, tag = 'input window, operand 0, single buffered']
    #allocation3 [shape = 's32[1]{0}', space=sflag, size = 0x4, scoped, tag = 'scoped memory for tpu_custom_call.1']
    #allocation4 [shape = 's32[1]{0}', space=sflag, size = 0x4, scoped, tag = 'scoped memory for tpu_custom_call.1']
    #allocation5 [shape = 'u8[8192]{0}', space=vmem, size = 0x2000, scoped, tag = 'output window, operand 0, single buffered']
    %6 = vsyncpa [#allocation3], 0
    %7 = vsyncpa [#allocation4], 0
    // Predicated region
    $region2: #{tpu_custom_call.1} parent=1 // pred_check
      _
    $region3: #{tpu_custom_call.1} parent=1 // pred_check_branch
      %9 = sbr.rel (0) target = $region5
    $region4: #{tpu_custom_call.1} parent=1 // pred_region
      %s11 = ssub.s32 256, 256
      %12 = vsyncadd [#allocation3], %s11
      %s13 = sshll.u32 [#allocation2], 4
      %s14 = int_to_ptr.vmem [resolvable:$true] %s13
      %19 = dma.hbm_to_vmem [thread:$0]  %s0, 256, %s14, [#allocation3], 128, 128, 8
    $region5: #{tpu_custom_call.1} parent=1 // pred_fallthru
      _
    // Predicated region
    $region6: #{tpu_custom_call.1} parent=1 // pred_check
      _
    $region7: #{tpu_custom_call.1} parent=1 // pred_check_branch
      %21 = sbr.rel (0) target = $region9
    $region8: #{tpu_custom_call.1} parent=1 // pred_region
      %22 = dma.done [#allocation3], 256
    $region9: #{tpu_custom_call.1} parent=1 // pred_fallthru
      _
    %v23 = vld [vmem:[#allocation2] sm:$0xff]
    %v24 = vld [vmem:[#allocation2 + $0x8] sm:$0xff]
    %v25 = vmul.f32 %v23, %v23
    %v26 = vmul.f32 %v24, %v24
    %v29 = vcombine.high %v25, %v25
    %v30 = vcombine.high %v26, %v26
    %vm33 = vcmask 1043456
    %v34 = vsel %vm33, %v25, 0.0
    %v35 = vrot.slane %v34, 4
    %v36 = vadd.f32 %v34, %v35
    %v37 = vrot.slane %v36, 2
    %v38 = vadd.f32 %v36, %v37
    %v39 = vrot.slane %v38, 1
    %v40 = vadd.f32 %v38, %v39
    %v41 = vsel %vm33, %v29, 0.0
    %v42 = vrot.slane %v41, 4
    %v43 = vadd.f32 %v41, %v42
    %v44 = vrot.slane %v43, 2
    %v45 = vadd.f32 %v43, %v44
    %v46 = vrot.slane %v45, 1
    %v47 = vadd.f32 %v45, %v46
    %v48 = vsel %vm33, %v26, 0.0
    %v49 = vrot.slane %v48, 4
    %v50 = vadd.f32 %v48, %v49
    %v51 = vrot.slane %v50, 2
    %v52 = vadd.f32 %v50, %v51
    %v53 = vrot.slane %v52, 1
    %v54 = vadd.f32 %v52, %v53
    %v55 = vsel %vm33, %v30, 0.0
    %v56 = vrot.slane %v55, 4
    %v57 = vadd.f32 %v55, %v56
    %v58 = vrot.slane %v57, 2
    %v59 = vadd.f32 %v57, %v58
    %v60 = vrot.slane %v59, 1
    %v61 = vadd.f32 %v59, %v60
    %v62 = vmax.f32 %v40, 1e-24
    %v63 = vmax.f32 %v47, 1e-24
    %v64 = vmax.f32 %v54, 1e-24
    %v65 = vmax.f32 %v61, 1e-24
    %v66 = vrsqrt.pop %v62
    %v67 = vrsqrt.pop %v63
    %v68 = vrsqrt.pop %v64
    %v69 = vrsqrt.pop %v65
    %v74 = vcombine.low %v66, %v67
    %v75 = vcombine.low %v68, %v69
    %v78 = vmul.f32 %v23, %v74
    %v79 = vmul.f32 %v24, %v75
    %80 = vst [vmem:[#allocation5] sm:$0xff] %v78
    %81 = vst [vmem:[#allocation5 + $0x8] sm:$0xff] %v79
    // Predicated region
    $region10: #{tpu_custom_call.1} parent=1 // pred_check
      _
    $region11: #{tpu_custom_call.1} parent=1 // pred_check_branch
      %83 = sbr.rel (0) target = $region13
    $region12: #{tpu_custom_call.1} parent=1 // pred_region
      %s85 = ssub.s32 256, 256
      %86 = vsyncadd [#allocation4], %s85
      %s87 = sshll.u32 [#allocation5], 4
      %s88 = int_to_ptr.vmem [resolvable:$true] %s87
      %93 = dma.vmem_to_hbm [thread:$0]  %s88, 256, %s1, [#allocation4], 128, 128, 8
    $region13: #{tpu_custom_call.1} parent=1 // pred_fallthru
      _
    // Predicated region
    $region14: #{tpu_custom_call.1} parent=1 // pred_check
      _
    $region15: #{tpu_custom_call.1} parent=1 // pred_check_branch
      %95 = sbr.rel (0) target = $region17
    $region16: #{tpu_custom_call.1} parent=1 // pred_region
      %96 = dma.done [#allocation4], 256
    $region17: #{tpu_custom_call.1} parent=1 // pred_fallthru
      _
    %97 = vsyncpa [#allocation3], 1
    %98 = vsyncpa [#allocation4], 1

</llo_original>
